<compile_context>
chip_gen: v7x
topology: tpu7x:2x2x1
jax: 0.10.0
libtpu: 0.0.40
codegen_flags: <defaults>
</compile_context>

<pallas_src>
import jax
import jax.numpy as jnp
from jax.experimental import pallas as pl
from jax.experimental.pallas import tpu as pltpu

# Largest f32 tile: 512 * 1024 elements = 2 MiB. Double-buffered in + out
# => ~8 MiB VMEM, safe on every TPU generation's scoped default.
_MAX_BLOCK_ELEMS = 512 * 1024
_LANE_CANDIDATES = (8192, 4096, 2048, 1024, 512, 256, 128)


def _mish_kernel(x_ref, o_ref):
    x = x_ref[...].astype(jnp.float32)
    # tanh(softplus(x)) via u = exp(-|x|) (numerically stable, no overflow):
    #   x >= 0 (u = e^-x):  (1 + 2u)       / (2u^2 + 2u + 1)
    #   x <  0 (u = e^x) :  (u^2 + 2u)     / (u^2 + 2u + 2)
    u = jnp.exp(-jnp.abs(x))
    pos = x >= 0.0
    num = jnp.where(pos, 1.0 + 2.0 * u, u * (u + 2.0))
    den = jnp.where(pos, 2.0 * u * (u + 1.0) + 1.0, u * (u + 2.0) + 2.0)
    y = x * (num / den)
    o_ref[...] = y.astype(o_ref.dtype)


def mish(x: jax.Array) -> jax.Array:
    """Elementwise Mish via Pallas, matching torch's x * tanh(softplus(x))."""
    orig_shape = x.shape
    orig_dtype = x.dtype
    n = x.size
    if n == 0:
        return x

    flat = x.reshape(-1)  # metadata-only for contiguous inputs

    # Widest lane dimension that divides numel (no padding needed for the
    # typical case of conv-activation shapes).
    cols = 128
    for c in _LANE_CANDIDATES:
        if n % c == 0:
            cols = c
            break

    pad = (-n) % cols
    if pad:
        # Ragged fallback only (numel not a multiple of 128). mish(0) == 0,
        # and the padded tail is sliced off below anyway.
        flat = jnp.pad(flat, (0, pad))
    total = n + pad
    rows = total // cols

    # Block rows: either the whole array (always a legal block shape) or a
    # multiple of 8 chosen so the tile stays <= _MAX_BLOCK_ELEMS.
    max_block_rows = max(8, (_MAX_BLOCK_ELEMS // cols) // 8 * 8)
    block_rows = rows if rows <= max_block_rows else max_block_rows

    x2d = flat.reshape(rows, cols)
    grid = (pl.cdiv(rows, block_rows),)

    out = pl.pallas_call(
        _mish_kernel,
        out_shape=jax.ShapeDtypeStruct((rows, cols), orig_dtype),
        grid=grid,
        in_specs=[pl.BlockSpec((block_rows, cols), lambda i: (i, 0))],
        out_specs=pl.BlockSpec((block_rows, cols), lambda i: (i, 0)),
        compiler_params=pltpu.CompilerParams(
            dimension_semantics=("parallel",),
        ),
    )(x2d)

    if pad:
        out = out.reshape(-1)[:n]
    return out.reshape(orig_shape)


def _mish_reference(x: jax.Array) -> jax.Array:
    xf = x.astype(jnp.float32)
    sp = jnp.maximum(xf, 0.0) + jnp.log1p(jnp.exp(-jnp.abs(xf)))
    return (xf * jnp.tanh(sp)).astype(x.dtype)


if __name__ == "__main__":
    key = jax.random.PRNGKey(0)
    k1, k2, k3 = jax.random.split(key, 3)

    # Small NCHW input consistent with typical conv activations.
    x = jax.random.normal(k1, (2, 4, 16, 16), dtype=jnp.float32) * 3.0
    y = mish(x)
    jax.block_until_ready(y)
    assert jnp.allclose(y, _mish_reference(x), atol=1e-5, rtol=1e-5)

    # Ragged-size input (numel not a multiple of 128) to exercise the
    # pad-and-slice fallback path.
    x_ragged = jax.random.normal(k2, (3, 5, 7), dtype=jnp.float32) * 3.0
    y_ragged = mish(x_ragged)
    jax.block_until_ready(y_ragged)
    assert jnp.allclose(y_ragged, _mish_reference(x_ragged), atol=1e-5, rtol=1e-5)

    # Larger multi-tile input to exercise the grid / double-buffered path.
    x_big = jax.random.normal(k3, (8, 32, 64, 64), dtype=jnp.float32) * 3.0
    y_big = mish(x_big)
    jax.block_until_ready(y_big)
    assert jnp.allclose(y_big, _mish_reference(x_big), atol=1e-5, rtol=1e-5)

    print("KERNEL_OK")
</pallas_src>

<mosaic_0001>
module attributes {stable_mosaic.version = 11 : i64} {
  func.func @_mish_kernel(%arg0: i32, %arg1: memref<1x2048xf32, #tpu.memory_space<vmem>>, %arg2: memref<1x2048xf32, #tpu.memory_space<vmem>>) attributes {dimension_semantics = [#tpu.dimension_semantics<parallel>], iteration_bounds = array<i64: 1>, scalar_prefetch = 0 : i64, scratch_operands = 0 : i64, tpu.core_type = #tpu.core_type<tc>, window_params = [{transform_indices = @transform_0, window_bounds = array<i64: 1, 2048>}, {transform_indices = @transform_1, window_bounds = array<i64: 1, 2048>}]} {
    %c0 = arith.constant 0 : index
    %c0_0 = arith.constant 0 : index
    %0 = vector.load %arg1[%c0, %c0_0] : memref<1x2048xf32, #tpu.memory_space<vmem>>, vector<1x2048xf32>
    %1 = math.absf %0 : vector<1x2048xf32>
    %cst = arith.constant 0.000000e+00 : f32
    %2 = vector.broadcast %cst : f32 to vector<1x2048xf32>
    %3 = arith.subf %2, %1 : vector<1x2048xf32>
    %4 = math.exp %3 : vector<1x2048xf32>
    %cst_1 = arith.constant 0.000000e+00 : f32
    %5 = vector.broadcast %cst_1 : f32 to vector<1x2048xf32>
    %6 = arith.cmpf oge, %0, %5 : vector<1x2048xf32>
    %cst_2 = arith.constant 2.000000e+00 : f32
    %7 = vector.broadcast %cst_2 : f32 to vector<1x2048xf32>
    %8 = arith.mulf %7, %4 : vector<1x2048xf32>
    %cst_3 = arith.constant 1.000000e+00 : f32
    %9 = vector.broadcast %cst_3 : f32 to vector<1x2048xf32>
    %10 = arith.addf %9, %8 : vector<1x2048xf32>
    %cst_4 = arith.constant 2.000000e+00 : f32
    %11 = vector.broadcast %cst_4 : f32 to vector<1x2048xf32>
    %12 = arith.addf %4, %11 : vector<1x2048xf32>
    %13 = arith.mulf %4, %12 : vector<1x2048xf32>
    %14 = arith.select %6, %10, %13 : vector<1x2048xi1>, vector<1x2048xf32>
    %cst_5 = arith.constant 2.000000e+00 : f32
    %15 = vector.broadcast %cst_5 : f32 to vector<1x2048xf32>
    %16 = arith.mulf %15, %4 : vector<1x2048xf32>
    %cst_6 = arith.constant 1.000000e+00 : f32
    %17 = vector.broadcast %cst_6 : f32 to vector<1x2048xf32>
    %18 = arith.addf %4, %17 : vector<1x2048xf32>
    %19 = arith.mulf %16, %18 : vector<1x2048xf32>
    %cst_7 = arith.constant 1.000000e+00 : f32
    %20 = vector.broadcast %cst_7 : f32 to vector<1x2048xf32>
    %21 = arith.addf %19, %20 : vector<1x2048xf32>
    %cst_8 = arith.constant 2.000000e+00 : f32
    %22 = vector.broadcast %cst_8 : f32 to vector<1x2048xf32>
    %23 = arith.addf %4, %22 : vector<1x2048xf32>
    %24 = arith.mulf %4, %23 : vector<1x2048xf32>
    %cst_9 = arith.constant 2.000000e+00 : f32
    %25 = vector.broadcast %cst_9 : f32 to vector<1x2048xf32>
    %26 = arith.addf %24, %25 : vector<1x2048xf32>
    %27 = arith.select %6, %21, %26 : vector<1x2048xi1>, vector<1x2048xf32>
    %28 = arith.divf %14, %27 : vector<1x2048xf32>
    %29 = arith.mulf %0, %28 : vector<1x2048xf32>
    %c0_10 = arith.constant 0 : index
    %c0_11 = arith.constant 0 : index
    %30 = vector.load %arg2[%c0_10, %c0_11] : memref<1x2048xf32, #tpu.memory_space<vmem>>, vector<1x2048xf32>
    tpu.vector_store %arg2[%c0_10, %c0_11], %29 {strides = array<i32>} : memref<1x2048xf32, #tpu.memory_space<vmem>>, vector<1x2048xf32>,
    return
  }
  func.func @transform_0(%arg0: i32) -> (i32, i32) {
    %c0_i32 = arith.constant 0 : i32
    %c0_i32_0 = arith.constant 0 : i32
    return %arg0, %c0_i32 : i32, i32
  }
  func.func @transform_1(%arg0: i32) -> (i32, i32) {
    %c0_i32 = arith.constant 0 : i32
    %c0_i32_0 = arith.constant 0 : i32
    return %arg0, %c0_i32 : i32, i32
  }
}

</mosaic_0001>

<llo_original>
// kernel: tpu_custom_call.1
$region0: #{tpu_custom_call.1}
  #allocation0 [shape = 'u32[]', space=smem, size = 0x4, offset = 0x4, fixed_abs, tag = 'smem constant byte address 0x4 - core index']
  #allocation1 [shape = 'u32[144,128]{1,0:T(1,128)}', space=vmem, size = 0x12000, scoped, tag = 'internal scratch']
  %s0 = inlined_call_operand.hbm [shape: f32[1,2048], index: 0, kind: input, shape index: {}]
  %s1 = inlined_call_operand.hbm [shape: f32[1,2048], index: 1, kind: output, shape index: {}]
  %s2 = sld [smem:[#allocation0]]
  $region18: #{tpu_custom_call.1} parent=0
    _
  %s4 = ssub.s32 1, %s2
  %s5 = scalar_select 0, %s4, %s2
  $region1: #{tpu_custom_call.1} parent=0
    #allocation2 [shape = 'u8[8192]{0}', space=vmem, size = 0x2000, scoped, tag = 'input window, operand 0, single buffered']
    #allocation3 [shape = 's32[1]{0}', space=sflag, size = 0x4, scoped, tag = 'scoped memory for tpu_custom_call.1']
    #allocation4 [shape = 's32[1]{0}', space=sflag, size = 0x4, scoped, tag = 'scoped memory for tpu_custom_call.1']
    #allocation5 [shape = 'u8[8192]{0}', space=vmem, size = 0x2000, scoped, tag = 'output window, operand 0, single buffered']
    %6 = vsyncpa [#allocation3], 0
    %7 = vsyncpa [#allocation4], 0
    // Predicated region
    $region2: #{tpu_custom_call.1} parent=1 // pred_check
      _
    $region3: #{tpu_custom_call.1} parent=1 // pred_check_branch
      %9 = sbr.rel (0) target = $region5
    $region4: #{tpu_custom_call.1} parent=1 // pred_region
      %s11 = ssub.s32 256, 256
      %12 = vsyncadd [#allocation3], %s11
      %s14 = sshll.u32 [#allocation2], 4
      %s15 = int_to_ptr.vmem [resolvable:$true] %s14
      %17 = dma.hbm_to_vmem [thread:$0]  %s0, 256, %s15, [#allocation3]
    $region5: #{tpu_custom_call.1} parent=1 // pred_fallthru
      _
    // Predicated region
    $region6: #{tpu_custom_call.1} parent=1 // pred_check
      _
    $region7: #{tpu_custom_call.1} parent=1 // pred_check_branch
      %19 = sbr.rel (0) target = $region9
    $region8: #{tpu_custom_call.1} parent=1 // pred_region
      %20 = dma.done [#allocation3], 256
    $region9: #{tpu_custom_call.1} parent=1 // pred_fallthru
      _
    %v21 = vld [vmem:[#allocation2] sm:$0xff]
    %v22 = vld [vmem:[#allocation2 + $0x8] sm:$0xff]
    %v23 = vand.u32 2147483647, %v21
    %v24 = vand.u32 2147483647, %v22
    %v25 = vsub.f32 0.0, %v23
    %v26 = vsub.f32 0.0, %v24
    %v27 = vmul.f32 %v25, 1.442695
    %v28 = vpow.pop %v27
    %v29 = vmul.f32 %v26, 1.442695
    %v30 = vpow.pop %v29
    %vm31 = vcmp.ge.f32.partialorder %v21, 0.0
    %vm32 = vcmp.ge.f32.partialorder %v22, 0.0
    %v33 = vmul.f32 %v28, 2.0
    %v34 = vmul.f32 %v30, 2.0
    %v35 = vadd.f32 %v33, 1.0
    %v36 = vadd.f32 %v34, 1.0
    %v37 = vadd.f32 %v28, 2.0
    %v38 = vadd.f32 %v30, 2.0
    %v39 = vmul.f32 %v28, %v37
    %v40 = vmul.f32 %v30, %v38
    %v41 = vsel %vm31, %v35, %v39
    %v42 = vsel %vm32, %v36, %v40
    %v43 = vadd.f32 %v28, 1.0
    %v44 = vadd.f32 %v30, 1.0
    %v45 = vmul.f32 %v33, %v43
    %v46 = vmul.f32 %v34, %v44
    %v47 = vadd.f32 %v45, 1.0
    %v48 = vadd.f32 %v46, 1.0
    %v49 = vadd.f32 %v39, 2.0
    %v50 = vadd.f32 %v40, 2.0
    %v51 = vsel %vm31, %v47, %v49
    %v52 = vsel %vm32, %v48, %v50
    %v53 = vrcp.pop %v51
    %v54 = vmul.f32 %v41, %v53
    %v55 = vrcp.pop %v52
    %v56 = vmul.f32 %v42, %v55
    %v57 = vmul.f32 %v21, %v54
    %v58 = vmul.f32 %v22, %v56
    %59 = vst [vmem:[#allocation5] sm:$0xff] %v57
    %60 = vst [vmem:[#allocation5 + $0x8] sm:$0xff] %v58
    // Predicated region
    $region10: #{tpu_custom_call.1} parent=1 // pred_check
      _
    $region11: #{tpu_custom_call.1} parent=1 // pred_check_branch
      %62 = sbr.rel (0) target = $region13
    $region12: #{tpu_custom_call.1} parent=1 // pred_region
      %s64 = ssub.s32 256, 256
      %65 = vsyncadd [#allocation4], %s64
      %s67 = sshll.u32 [#allocation5], 4
      %s68 = int_to_ptr.vmem [resolvable:$true] %s67
      %70 = dma.vmem_to_hbm [thread:$0]  %s68, 256, %s1, [#allocation4]
    $region13: #{tpu_custom_call.1} parent=1 // pred_fallthru
      _
    // Predicated region
    $region14: #{tpu_custom_call.1} parent=1 // pred_check
      _
    $region15: #{tpu_custom_call.1} parent=1 // pred_check_branch
      %72 = sbr.rel (0) target = $region17
    $region16: #{tpu_custom_call.1} parent=1 // pred_region
      %73 = dma.done [#allocation4], 256
    $region17: #{tpu_custom_call.1} parent=1 // pred_fallthru
      _
    %74 = vsyncpa [#allocation3], 1
    %75 = vsyncpa [#allocation4], 1

</llo_original>
